<compile_context>
chip_gen: v7x
topology: tpu7x:2x2x1
jax: 0.10.0
libtpu: 0.0.40
codegen_flags: <defaults>
</compile_context>

<pallas_src>
import functools

import numpy as np
import jax
import jax.numpy as jnp
from jax import lax
from jax.experimental import pallas as pl
from jax.experimental.pallas import tpu as pltpu


# ----------------------------------------------------------------------------
# Fused kernel: segment-sum pooling (accumulated across the grid) + loss epilogue
# ----------------------------------------------------------------------------
def residual_fused_kernel(layer_ids_ref,     # SMEM (n_tiles,) int32 (scalar prefetch)
                          packed_ref,        # VMEM (TR, R, C) f32  segment rows
                          invlen_ref,        # VMEM (1, R, C)  f32  1/seg_len/n_layers
                          sig_ref,           # VMEM (R, 1)     f32  +-1 signature
                          loss_ref,          # VMEM (1, 1)     f32  output
                          acc_ref,           # VMEM (R, C)     f32  scratch accumulator
                          *, k, threshold, lamda):
    t = pl.program_id(0)

    @pl.when(t == 0)
    def _init():
        acc_ref[...] = jnp.zeros_like(acc_ref)

    # Partial adaptive-pool segment sums for this tile (pure VPU: sublane adds),
    # scaled by this layer's pooling coefficients. Zero-padded rows add nothing.
    part = jnp.sum(packed_ref[...], axis=0)                     # (R, C)
    acc_ref[...] += part * invlen_ref[0]

    @pl.when(t == pl.num_programs(0) - 1)
    def _epilogue():
        w = acc_ref[...]                                        # (R, C) extraction
        R, C = w.shape
        sig = sig_ref[...]                                      # (R, 1)

        abs_w = jnp.abs(w)
        col = lax.broadcasted_iota(jnp.int32, (R, C), 1)
        selected = jnp.zeros((R, C), jnp.bool_)
        big = jnp.float32(np.finfo(np.float32).max)             # finite sentinel

        # Zero the k smallest-|.| entries per row (ties -> lowest column index),
        # mimicking argsort(|w|)[:, :k].  Only the selection mask is carried;
        # the masked sum happens once after the loop (fewer XLU reductions).
        for _ in range(k):
            m = jnp.min(abs_w, axis=1, keepdims=True)
            is_min = abs_w == m
            idx = jnp.min(jnp.where(is_min, col, C), axis=1, keepdims=True)
            sel = col == idx
            selected = jnp.logical_or(selected, sel)
            abs_w = jnp.where(sel, big, abs_w)

        kept = jnp.where(selected, 0.0, w)
        pred = jnp.sum(kept, axis=1, keepdims=True) / jnp.float32(C)   # (R, 1)
        contrib = jnp.maximum(jnp.float32(threshold) - sig * pred, 0.0)
        loss_ref[...] = jnp.float32(lamda) * jnp.sum(
            contrib, axis=(0, 1), keepdims=True)


# ----------------------------------------------------------------------------
# Host glue: exact adaptive_avg_pool1d segments, repacked lane-dense
# ----------------------------------------------------------------------------
def _adaptive_segments(L, O):
    j = np.arange(O, dtype=np.int64)
    s = (j * L) // O
    e = ((j + 1) * L + O - 1) // O
    return s, e - s


def _pick_row_tile(max_rows):
    # (TR, 8, 128) f32 tile = 4*TR KiB; double-buffered => 8*TR KiB of VMEM.
    # TR=128 (1 MiB of buffers) fits even v5e's 16 MiB scoped-VMEM default with
    # plenty of headroom; the kernel is HBM-bound, so bigger buys little.
    for tr in (128, 64, 32, 16, 8):
        if max_rows >= tr:
            return tr
    return 8


def _pack_segments(params, m_layers, R, C, row_tile=None):
    """Repack each layer's adaptive-avg-pool segments into lane-dense rows.

    Column (r, c) of a layer's (S_l, R, C) block holds the weight segment that
    feeds extraction[r, c], zero padded to the layer's max segment length.
    Moves ~numel(weights) elements total (the dense pooling matrix needed O x L).
    """
    O = R * C
    n_layers = len(m_layers)
    layers = []
    for name in m_layers:
        w = np.asarray(params[name], np.float32).reshape(-1)
        L = (w.size // C) * C                       # numel // C * C truncation
        s, lens = _adaptive_segments(L, O)
        S = int(lens.max())
        p = np.arange(S)[:, None]                   # (S, 1)
        idx = np.minimum(s[None, :] + p, L - 1)     # (S, O)
        packed = np.where(p < lens[None, :], w[:L][idx], 0.0).astype(np.float32)
        inv = ((np.float32(1.0) / lens.astype(np.float32)).reshape(R, C)
               / np.float32(n_layers)).astype(np.float32)
        layers.append((packed.reshape(S, R, C), inv))

    if row_tile is None:
        row_tile = _pick_row_tile(max(b.shape[0] for b, _ in layers))

    blocks, invs, layer_ids = [], [], []
    for li, (packed, inv) in enumerate(layers):
        S = packed.shape[0]
        S_pad = ((S + row_tile - 1) // row_tile) * row_tile
        blocks.append(np.pad(packed, ((0, S_pad - S), (0, 0), (0, 0))))
        invs.append(inv)
        layer_ids += [li] * (S_pad // row_tile)

    packed_all = np.concatenate(blocks, axis=0)                  # (P, R, C)
    inv_all = np.stack(invs, axis=0).astype(np.float32)          # (n_layers, R, C)
    return packed_all, inv_all, np.asarray(layer_ids, np.int32), row_tile


def residual_forward(params, m_layers, sig, objective_size, threshold, lamda,
                     divider, row_tile=None):
    R, C = objective_size
    packed, inv, layer_ids, row_tile = _pack_segments(params, m_layers, R, C,
                                                      row_tile)
    n_tiles = packed.shape[0] // row_tile
    k = int(C / divider + 0.5) if divider != 0 else 0

    packed = jnp.asarray(packed)
    inv = jnp.asarray(inv)
    layer_ids = jnp.asarray(layer_ids)
    sig = jnp.asarray(sig, jnp.float32).reshape(R, 1)

    grid_spec = pltpu.PrefetchScalarGridSpec(
        num_scalar_prefetch=1,
        grid=(n_tiles,),
        in_specs=[
            pl.BlockSpec((row_tile, R, C), lambda t, lyr: (t, 0, 0)),
            pl.BlockSpec((1, R, C), lambda t, lyr: (lyr[t], 0, 0)),
            pl.BlockSpec((R, 1), lambda t, lyr: (0, 0)),
        ],
        out_specs=pl.BlockSpec((1, 1), lambda t, lyr: (0, 0)),
        scratch_shapes=[pltpu.VMEM((R, C), jnp.float32)],
    )

    loss = pl.pallas_call(
        functools.partial(residual_fused_kernel, k=k, threshold=threshold,
                          lamda=lamda),
        out_shape=jax.ShapeDtypeStruct((1, 1), jnp.float32),
        grid_spec=grid_spec,
        compiler_params=pltpu.CompilerParams(
            dimension_semantics=("arbitrary",)),   # carried accumulator axis
        cost_estimate=pl.CostEstimate(
            flops=2 * int(packed.size),
            transcendentals=0,
            bytes_accessed=4 * int(packed.size + inv.size + R + 1)),
    )(layer_ids, packed, inv, sig)

    return loss[0, 0]


# ----------------------------------------------------------------------------
# Pure-numpy reference of the PyTorch forward (for verification)
# ----------------------------------------------------------------------------
def reference_forward(params, m_layers, sig, objective_size, threshold, lamda,
                      divider):
    R, C = objective_size
    O = R * C
    ext = None
    for name in m_layers:
        w = np.asarray(params[name], np.float32).reshape(-1)
        L = (w.size // C) * C
        w = w[:L]
        pooled = np.empty(O, np.float32)
        for j in range(O):
            s = (j * L) // O
            e = ((j + 1) * L + O - 1) // O
            pooled[j] = w[s:e].mean()
        pooled = pooled.reshape(R, C)
        ext = pooled if ext is None else ext + pooled
    ext = ext / len(m_layers)
    if divider != 0:
        k = int(C / divider + 0.5)
        for r in range(R):
            idx = np.argsort(np.abs(ext[r]))[:k]
            ext[r, idx] = 0.0
    pred = ext.mean(axis=1)
    return float(lamda * np.maximum(threshold - np.asarray(sig) * pred, 0.0).sum())


if __name__ == "__main__":
    key = jax.random.PRNGKey(0)
    k1, k2, k3, k4 = jax.random.split(key, 4)

    # Synthetic small "model" (named parameters); only *.weight in m_layers counts.
    params = {
        "conv1.weight": jax.random.normal(k1, (4, 4, 3, 3), jnp.float32) * 0.1,  # 144 elems
        "conv1.bias": jax.random.normal(k2, (4,), jnp.float32) * 0.1,             # ignored
        "fc.weight": jax.random.normal(k3, (16, 64), jnp.float32) * 0.1,          # 1024 elems
    }
    m_layers = ["conv1.weight", "fc.weight"]

    objective_size = (8, 128)   # (R, C): small stand-in for the 256-row signature
    threshold, lamda, divider = 0.1, 1.0, 10

    # Deterministic +/-1 signature (stands in for the RSA-derived key).
    sig = jnp.where(jax.random.bernoulli(k4, 0.5, (objective_size[0],)), 1.0, -1.0)

    loss = residual_forward(params, m_layers, sig, objective_size,
                            threshold, lamda, divider)
    loss = jax.block_until_ready(loss)

    ref = reference_forward(
        {k: np.asarray(v) for k, v in params.items()},
        m_layers, np.asarray(sig), objective_size, threshold, lamda, divider,
    )
    np.testing.assert_allclose(float(loss), ref, rtol=1e-2, atol=1e-3)

    print("KERNEL_OK")
</pallas_src>

<mosaic_0001>
module attributes {stable_mosaic.version = 11 : i64} {
  func.func @residual_fused_kernel(%arg0: i32, %arg1: memref<2xi32, #tpu.memory_space<smem>>, %arg2: memref<8x8x128xf32, #tpu.memory_space<vmem>>, %arg3: memref<1x8x128xf32, #tpu.memory_space<vmem>>, %arg4: memref<8x1xf32, #tpu.memory_space<vmem>>, %arg5: memref<1x1xf32, #tpu.memory_space<vmem>>, %arg6: memref<8x128xf32, #tpu.memory_space<vmem>>) attributes {dimension_semantics = [#tpu.dimension_semantics<arbitrary>], iteration_bounds = array<i64: 2>, scalar_prefetch = 1 : i64, scratch_operands = 1 : i64, tpu.core_type = #tpu.core_type<tc>, window_params = [{transform_indices = @transform_0, window_bounds = array<i64: 8, 8, 128>}, {transform_indices = @transform_1, window_bounds = array<i64: 1, 8, 128>}, {pipeline_mode = #tpu.pipeline_mode<synchronous>, transform_indices = @transform_2, window_bounds = array<i64: 8, 1>}, {pipeline_mode = #tpu.pipeline_mode<synchronous>, transform_indices = @transform_3, window_bounds = array<i64: 1, 1>}]} {
    %c0_i32 = arith.constant 0 : i32
    %0 = arith.cmpi eq, %arg0, %c0_i32 : i32
    %1 = arith.extui %0 : i1 to i32
    %c0_i32_0 = arith.constant 0 : i32
    %2 = arith.cmpi ne, %1, %c0_i32_0 : i32
    scf.if %2 {
      %cst_11 = arith.constant 0.000000e+00 : f32
      %14 = vector.broadcast %cst_11 : f32 to vector<8x128xf32>
      %c0_12 = arith.constant 0 : index
      %c0_13 = arith.constant 0 : index
      %15 = vector.load %arg6[%c0_12, %c0_13] : memref<8x128xf32, #tpu.memory_space<vmem>>, vector<8x128xf32>
      tpu.vector_store %arg6[%c0_12, %c0_13], %14 {strides = array<i32>} : memref<8x128xf32, #tpu.memory_space<vmem>>, vector<8x128xf32>,
    } else {
    }
    %c0 = arith.constant 0 : index
    %c0_1 = arith.constant 0 : index
    %c0_2 = arith.constant 0 : index
    %3 = vector.load %arg2[%c0, %c0_1, %c0_2] : memref<8x8x128xf32, #tpu.memory_space<vmem>>, vector<8x8x128xf32>
    %cst = arith.constant dense<0.000000e+00> : vector<8x128xf32>
    %4 = vector.multi_reduction <add>, %3, %cst [0] : vector<8x8x128xf32> to vector<8x128xf32>
    %c0_3 = arith.constant 0 : index
    %c0_4 = arith.constant 0 : index
    %5 = vector.load %arg6[%c0_3, %c0_4] : memref<8x128xf32, #tpu.memory_space<vmem>>, vector<8x128xf32>
    %c0_5 = arith.constant 0 : index
    %c0_6 = arith.constant 0 : index
    %c0_7 = arith.constant 0 : index
    %6 = vector.load %arg3[%c0_5, %c0_6, %c0_7] : memref<1x8x128xf32, #tpu.memory_space<vmem>>, vector<1x8x128xf32>
    %7 = vector.shape_cast %6 : vector<1x8x128xf32> to vector<8x128xf32>
    %8 = arith.mulf %4, %7 : vector<8x128xf32>
    %9 = arith.addf %5, %8 : vector<8x128xf32>
    %c0_8 = arith.constant 0 : index
    %c0_9 = arith.constant 0 : index
    %10 = vector.load %arg6[%c0_8, %c0_9] : memref<8x128xf32, #tpu.memory_space<vmem>>, vector<8x128xf32>
    tpu.vector_store %arg6[%c0_8, %c0_9], %9 {strides = array<i32>} : memref<8x128xf32, #tpu.memory_space<vmem>>, vector<8x128xf32>,
    %c1_i32 = arith.constant 1 : i32
    %11 = arith.cmpi eq, %arg0, %c1_i32 : i32
    %12 = arith.extui %11 : i1 to i32
    %c0_i32_10 = arith.constant 0 : i32
    %13 = arith.cmpi ne, %12, %c0_i32_10 : i32
    scf.if %13 {
      %c0_11 = arith.constant 0 : index
      %c0_12 = arith.constant 0 : index
      %14 = vector.load %arg6[%c0_11, %c0_12] : memref<8x128xf32, #tpu.memory_space<vmem>>, vector<8x128xf32>
      %c0_13 = arith.constant 0 : index
      %c0_14 = arith.constant 0 : index
      %15 = vector.load %arg4[%c0_13, %c0_14] : memref<8x1xf32, #tpu.memory_space<vmem>>, vector<8x1xf32>
      %16 = math.absf %14 : vector<8x128xf32>
      %17 = tpu.iota {dimensions = array<i32: 1>} : vector<8x128xi32>
      %false = arith.constant false
      %18 = vector.broadcast %false : i1 to vector<8x128xi1>
      %cst_15 = arith.constant dense<0x7F800000> : vector<8xf32>
      %19 = vector.multi_reduction <minimumf>, %16, %cst_15 [1] : vector<8x128xf32> to vector<8xf32>
      %20 = vector.shape_cast %19 : vector<8xf32> to vector<8x1xf32>
      %21 = vector.broadcast %20 : vector<8x1xf32> to vector<8x128xf32>
      %22 = arith.cmpf oeq, %16, %21 : vector<8x128xf32>
      %c128_i32 = arith.constant 128 : i32
      %23 = vector.broadcast %c128_i32 : i32 to vector<8x128xi32>
      %24 = arith.select %22, %17, %23 : vector<8x128xi1>, vector<8x128xi32>
      %cst_16 = arith.constant dense<2147483647> : vector<8xi32>
      %25 = vector.multi_reduction <minsi>, %24, %cst_16 [1] : vector<8x128xi32> to vector<8xi32>
      %26 = vector.shape_cast %25 : vector<8xi32> to vector<8x1xi32>
      %27 = vector.broadcast %26 : vector<8x1xi32> to vector<8x128xi32>
      %28 = arith.cmpi eq, %17, %27 : vector<8x128xi32>
      %29 = arith.ori %18, %28 : vector<8x128xi1>
      %cst_17 = arith.constant 3.40282347E+38 : f32
      %30 = vector.broadcast %cst_17 : f32 to vector<8x128xf32>
      %31 = arith.select %28, %30, %16 : vector<8x128xi1>, vector<8x128xf32>
      %cst_18 = arith.constant dense<0x7F800000> : vector<8xf32>
      %32 = vector.multi_reduction <minimumf>, %31, %cst_18 [1] : vector<8x128xf32> to vector<8xf32>
      %33 = vector.shape_cast %32 : vector<8xf32> to vector<8x1xf32>
      %34 = vector.broadcast %33 : vector<8x1xf32> to vector<8x128xf32>
      %35 = arith.cmpf oeq, %31, %34 : vector<8x128xf32>
      %c128_i32_19 = arith.constant 128 : i32
      %36 = vector.broadcast %c128_i32_19 : i32 to vector<8x128xi32>
      %37 = arith.select %35, %17, %36 : vector<8x128xi1>, vector<8x128xi32>
      %cst_20 = arith.constant dense<2147483647> : vector<8xi32>
      %38 = vector.multi_reduction <minsi>, %37, %cst_20 [1] : vector<8x128xi32> to vector<8xi32>
      %39 = vector.shape_cast %38 : vector<8xi32> to vector<8x1xi32>
      %40 = vector.broadcast %39 : vector<8x1xi32> to vector<8x128xi32>
      %41 = arith.cmpi eq, %17, %40 : vector<8x128xi32>
      %42 = arith.ori %29, %41 : vector<8x128xi1>
      %cst_21 = arith.constant 3.40282347E+38 : f32
      %43 = vector.broadcast %cst_21 : f32 to vector<8x128xf32>
      %44 = arith.select %41, %43, %31 : vector<8x128xi1>, vector<8x128xf32>
      %cst_22 = arith.constant dense<0x7F800000> : vector<8xf32>
      %45 = vector.multi_reduction <minimumf>, %44, %cst_22 [1] : vector<8x128xf32> to vector<8xf32>
      %46 = vector.shape_cast %45 : vector<8xf32> to vector<8x1xf32>
      %47 = vector.broadcast %46 : vector<8x1xf32> to vector<8x128xf32>
      %48 = arith.cmpf oeq, %44, %47 : vector<8x128xf32>
      %c128_i32_23 = arith.constant 128 : i32
      %49 = vector.broadcast %c128_i32_23 : i32 to vector<8x128xi32>
      %50 = arith.select %48, %17, %49 : vector<8x128xi1>, vector<8x128xi32>
      %cst_24 = arith.constant dense<2147483647> : vector<8xi32>
      %51 = vector.multi_reduction <minsi>, %50, %cst_24 [1] : vector<8x128xi32> to vector<8xi32>
      %52 = vector.shape_cast %51 : vector<8xi32> to vector<8x1xi32>
      %53 = vector.broadcast %52 : vector<8x1xi32> to vector<8x128xi32>
      %54 = arith.cmpi eq, %17, %53 : vector<8x128xi32>
      %55 = arith.ori %42, %54 : vector<8x128xi1>
      %cst_25 = arith.constant 3.40282347E+38 : f32
      %56 = vector.broadcast %cst_25 : f32 to vector<8x128xf32>
      %57 = arith.select %54, %56, %44 : vector<8x128xi1>, vector<8x128xf32>
      %cst_26 = arith.constant dense<0x7F800000> : vector<8xf32>
      %58 = vector.multi_reduction <minimumf>, %57, %cst_26 [1] : vector<8x128xf32> to vector<8xf32>
      %59 = vector.shape_cast %58 : vector<8xf32> to vector<8x1xf32>
      %60 = vector.broadcast %59 : vector<8x1xf32> to vector<8x128xf32>
      %61 = arith.cmpf oeq, %57, %60 : vector<8x128xf32>
      %c128_i32_27 = arith.constant 128 : i32
      %62 = vector.broadcast %c128_i32_27 : i32 to vector<8x128xi32>
      %63 = arith.select %61, %17, %62 : vector<8x128xi1>, vector<8x128xi32>
      %cst_28 = arith.constant dense<2147483647> : vector<8xi32>
      %64 = vector.multi_reduction <minsi>, %63, %cst_28 [1] : vector<8x128xi32> to vector<8xi32>
      %65 = vector.shape_cast %64 : vector<8xi32> to vector<8x1xi32>
      %66 = vector.broadcast %65 : vector<8x1xi32> to vector<8x128xi32>
      %67 = arith.cmpi eq, %17, %66 : vector<8x128xi32>
      %68 = arith.ori %55, %67 : vector<8x128xi1>
      %cst_29 = arith.constant 3.40282347E+38 : f32
      %69 = vector.broadcast %cst_29 : f32 to vector<8x128xf32>
      %70 = arith.select %67, %69, %57 : vector<8x128xi1>, vector<8x128xf32>
      %cst_30 = arith.constant dense<0x7F800000> : vector<8xf32>
      %71 = vector.multi_reduction <minimumf>, %70, %cst_30 [1] : vector<8x128xf32> to vector<8xf32>
      %72 = vector.shape_cast %71 : vector<8xf32> to vector<8x1xf32>
      %73 = vector.broadcast %72 : vector<8x1xf32> to vector<8x128xf32>
      %74 = arith.cmpf oeq, %70, %73 : vector<8x128xf32>
      %c128_i32_31 = arith.constant 128 : i32
      %75 = vector.broadcast %c128_i32_31 : i32 to vector<8x128xi32>
      %76 = arith.select %74, %17, %75 : vector<8x128xi1>, vector<8x128xi32>
      %cst_32 = arith.constant dense<2147483647> : vector<8xi32>
      %77 = vector.multi_reduction <minsi>, %76, %cst_32 [1] : vector<8x128xi32> to vector<8xi32>
      %78 = vector.shape_cast %77 : vector<8xi32> to vector<8x1xi32>
      %79 = vector.broadcast %78 : vector<8x1xi32> to vector<8x128xi32>
      %80 = arith.cmpi eq, %17, %79 : vector<8x128xi32>
      %81 = arith.ori %68, %80 : vector<8x128xi1>
      %cst_33 = arith.constant 3.40282347E+38 : f32
      %82 = vector.broadcast %cst_33 : f32 to vector<8x128xf32>
      %83 = arith.select %80, %82, %70 : vector<8x128xi1>, vector<8x128xf32>
      %cst_34 = arith.constant dense<0x7F800000> : vector<8xf32>
      %84 = vector.multi_reduction <minimumf>, %83, %cst_34 [1] : vector<8x128xf32> to vector<8xf32>
      %85 = vector.shape_cast %84 : vector<8xf32> to vector<8x1xf32>
      %86 = vector.broadcast %85 : vector<8x1xf32> to vector<8x128xf32>
      %87 = arith.cmpf oeq, %83, %86 : vector<8x128xf32>
      %c128_i32_35 = arith.constant 128 : i32
      %88 = vector.broadcast %c128_i32_35 : i32 to vector<8x128xi32>
      %89 = arith.select %87, %17, %88 : vector<8x128xi1>, vector<8x128xi32>
      %cst_36 = arith.constant dense<2147483647> : vector<8xi32>
      %90 = vector.multi_reduction <minsi>, %89, %cst_36 [1] : vector<8x128xi32> to vector<8xi32>
      %91 = vector.shape_cast %90 : vector<8xi32> to vector<8x1xi32>
      %92 = vector.broadcast %91 : vector<8x1xi32> to vector<8x128xi32>
      %93 = arith.cmpi eq, %17, %92 : vector<8x128xi32>
      %94 = arith.ori %81, %93 : vector<8x128xi1>
      %cst_37 = arith.constant 3.40282347E+38 : f32
      %95 = vector.broadcast %cst_37 : f32 to vector<8x128xf32>
      %96 = arith.select %93, %95, %83 : vector<8x128xi1>, vector<8x128xf32>
      %cst_38 = arith.constant dense<0x7F800000> : vector<8xf32>
      %97 = vector.multi_reduction <minimumf>, %96, %cst_38 [1] : vector<8x128xf32> to vector<8xf32>
      %98 = vector.shape_cast %97 : vector<8xf32> to vector<8x1xf32>
      %99 = vector.broadcast %98 : vector<8x1xf32> to vector<8x128xf32>
      %100 = arith.cmpf oeq, %96, %99 : vector<8x128xf32>
      %c128_i32_39 = arith.constant 128 : i32
      %101 = vector.broadcast %c128_i32_39 : i32 to vector<8x128xi32>
      %102 = arith.select %100, %17, %101 : vector<8x128xi1>, vector<8x128xi32>
      %cst_40 = arith.constant dense<2147483647> : vector<8xi32>
      %103 = vector.multi_reduction <minsi>, %102, %cst_40 [1] : vector<8x128xi32> to vector<8xi32>
      %104 = vector.shape_cast %103 : vector<8xi32> to vector<8x1xi32>
      %105 = vector.broadcast %104 : vector<8x1xi32> to vector<8x128xi32>
      %106 = arith.cmpi eq, %17, %105 : vector<8x128xi32>
      %107 = arith.ori %94, %106 : vector<8x128xi1>
      %cst_41 = arith.constant 3.40282347E+38 : f32
      %108 = vector.broadcast %cst_41 : f32 to vector<8x128xf32>
      %109 = arith.select %106, %108, %96 : vector<8x128xi1>, vector<8x128xf32>
      %cst_42 = arith.constant dense<0x7F800000> : vector<8xf32>
      %110 = vector.multi_reduction <minimumf>, %109, %cst_42 [1] : vector<8x128xf32> to vector<8xf32>
      %111 = vector.shape_cast %110 : vector<8xf32> to vector<8x1xf32>
      %112 = vector.broadcast %111 : vector<8x1xf32> to vector<8x128xf32>
      %113 = arith.cmpf oeq, %109, %112 : vector<8x128xf32>
      %c128_i32_43 = arith.constant 128 : i32
      %114 = vector.broadcast %c128_i32_43 : i32 to vector<8x128xi32>
      %115 = arith.select %113, %17, %114 : vector<8x128xi1>, vector<8x128xi32>
      %cst_44 = arith.constant dense<2147483647> : vector<8xi32>
      %116 = vector.multi_reduction <minsi>, %115, %cst_44 [1] : vector<8x128xi32> to vector<8xi32>
      %117 = vector.shape_cast %116 : vector<8xi32> to vector<8x1xi32>
      %118 = vector.broadcast %117 : vector<8x1xi32> to vector<8x128xi32>
      %119 = arith.cmpi eq, %17, %118 : vector<8x128xi32>
      %120 = arith.ori %107, %119 : vector<8x128xi1>
      %cst_45 = arith.constant 3.40282347E+38 : f32
      %121 = vector.broadcast %cst_45 : f32 to vector<8x128xf32>
      %122 = arith.select %119, %121, %109 : vector<8x128xi1>, vector<8x128xf32>
      %cst_46 = arith.constant dense<0x7F800000> : vector<8xf32>
      %123 = vector.multi_reduction <minimumf>, %122, %cst_46 [1] : vector<8x128xf32> to vector<8xf32>
      %124 = vector.shape_cast %123 : vector<8xf32> to vector<8x1xf32>
      %125 = vector.broadcast %124 : vector<8x1xf32> to vector<8x128xf32>
      %126 = arith.cmpf oeq, %122, %125 : vector<8x128xf32>
      %c128_i32_47 = arith.constant 128 : i32
      %127 = vector.broadcast %c128_i32_47 : i32 to vector<8x128xi32>
      %128 = arith.select %126, %17, %127 : vector<8x128xi1>, vector<8x128xi32>
      %cst_48 = arith.constant dense<2147483647> : vector<8xi32>
      %129 = vector.multi_reduction <minsi>, %128, %cst_48 [1] : vector<8x128xi32> to vector<8xi32>
      %130 = vector.shape_cast %129 : vector<8xi32> to vector<8x1xi32>
      %131 = vector.broadcast %130 : vector<8x1xi32> to vector<8x128xi32>
      %132 = arith.cmpi eq, %17, %131 : vector<8x128xi32>
      %133 = arith.ori %120, %132 : vector<8x128xi1>
      %cst_49 = arith.constant 3.40282347E+38 : f32
      %134 = vector.broadcast %cst_49 : f32 to vector<8x128xf32>
      %135 = arith.select %132, %134, %122 : vector<8x128xi1>, vector<8x128xf32>
      %cst_50 = arith.constant dense<0x7F800000> : vector<8xf32>
      %136 = vector.multi_reduction <minimumf>, %135, %cst_50 [1] : vector<8x128xf32> to vector<8xf32>
      %137 = vector.shape_cast %136 : vector<8xf32> to vector<8x1xf32>
      %138 = vector.broadcast %137 : vector<8x1xf32> to vector<8x128xf32>
      %139 = arith.cmpf oeq, %135, %138 : vector<8x128xf32>
      %c128_i32_51 = arith.constant 128 : i32
      %140 = vector.broadcast %c128_i32_51 : i32 to vector<8x128xi32>
      %141 = arith.select %139, %17, %140 : vector<8x128xi1>, vector<8x128xi32>
      %cst_52 = arith.constant dense<2147483647> : vector<8xi32>
      %142 = vector.multi_reduction <minsi>, %141, %cst_52 [1] : vector<8x128xi32> to vector<8xi32>
      %143 = vector.shape_cast %142 : vector<8xi32> to vector<8x1xi32>
      %144 = vector.broadcast %143 : vector<8x1xi32> to vector<8x128xi32>
      %145 = arith.cmpi eq, %17, %144 : vector<8x128xi32>
      %146 = arith.ori %133, %145 : vector<8x128xi1>
      %cst_53 = arith.constant 3.40282347E+38 : f32
      %147 = vector.broadcast %cst_53 : f32 to vector<8x128xf32>
      %148 = arith.select %145, %147, %135 : vector<8x128xi1>, vector<8x128xf32>
      %cst_54 = arith.constant dense<0x7F800000> : vector<8xf32>
      %149 = vector.multi_reduction <minimumf>, %148, %cst_54 [1] : vector<8x128xf32> to vector<8xf32>
      %150 = vector.shape_cast %149 : vector<8xf32> to vector<8x1xf32>
      %151 = vector.broadcast %150 : vector<8x1xf32> to vector<8x128xf32>
      %152 = arith.cmpf oeq, %148, %151 : vector<8x128xf32>
      %c128_i32_55 = arith.constant 128 : i32
      %153 = vector.broadcast %c128_i32_55 : i32 to vector<8x128xi32>
      %154 = arith.select %152, %17, %153 : vector<8x128xi1>, vector<8x128xi32>
      %cst_56 = arith.constant dense<2147483647> : vector<8xi32>
      %155 = vector.multi_reduction <minsi>, %154, %cst_56 [1] : vector<8x128xi32> to vector<8xi32>
      %156 = vector.shape_cast %155 : vector<8xi32> to vector<8x1xi32>
      %157 = vector.broadcast %156 : vector<8x1xi32> to vector<8x128xi32>
      %158 = arith.cmpi eq, %17, %157 : vector<8x128xi32>
      %159 = arith.ori %146, %158 : vector<8x128xi1>
      %cst_57 = arith.constant 3.40282347E+38 : f32
      %160 = vector.broadcast %cst_57 : f32 to vector<8x128xf32>
      %161 = arith.select %158, %160, %148 : vector<8x128xi1>, vector<8x128xf32>
      %cst_58 = arith.constant dense<0x7F800000> : vector<8xf32>
      %162 = vector.multi_reduction <minimumf>, %161, %cst_58 [1] : vector<8x128xf32> to vector<8xf32>
      %163 = vector.shape_cast %162 : vector<8xf32> to vector<8x1xf32>
      %164 = vector.broadcast %163 : vector<8x1xf32> to vector<8x128xf32>
      %165 = arith.cmpf oeq, %161, %164 : vector<8x128xf32>
      %c128_i32_59 = arith.constant 128 : i32
      %166 = vector.broadcast %c128_i32_59 : i32 to vector<8x128xi32>
      %167 = arith.select %165, %17, %166 : vector<8x128xi1>, vector<8x128xi32>
      %cst_60 = arith.constant dense<2147483647> : vector<8xi32>
      %168 = vector.multi_reduction <minsi>, %167, %cst_60 [1] : vector<8x128xi32> to vector<8xi32>
      %169 = vector.shape_cast %168 : vector<8xi32> to vector<8x1xi32>
      %170 = vector.broadcast %169 : vector<8x1xi32> to vector<8x128xi32>
      %171 = arith.cmpi eq, %17, %170 : vector<8x128xi32>
      %172 = arith.ori %159, %171 : vector<8x128xi1>
      %cst_61 = arith.constant 3.40282347E+38 : f32
      %173 = vector.broadcast %cst_61 : f32 to vector<8x128xf32>
      %174 = arith.select %171, %173, %161 : vector<8x128xi1>, vector<8x128xf32>
      %cst_62 = arith.constant dense<0x7F800000> : vector<8xf32>
      %175 = vector.multi_reduction <minimumf>, %174, %cst_62 [1] : vector<8x128xf32> to vector<8xf32>
      %176 = vector.shape_cast %175 : vector<8xf32> to vector<8x1xf32>
      %177 = vector.broadcast %176 : vector<8x1xf32> to vector<8x128xf32>
      %178 = arith.cmpf oeq, %174, %177 : vector<8x128xf32>
      %c128_i32_63 = arith.constant 128 : i32
      %179 = vector.broadcast %c128_i32_63 : i32 to vector<8x128xi32>
      %180 = arith.select %178, %17, %179 : vector<8x128xi1>, vector<8x128xi32>
      %cst_64 = arith.constant dense<2147483647> : vector<8xi32>
      %181 = vector.multi_reduction <minsi>, %180, %cst_64 [1] : vector<8x128xi32> to vector<8xi32>
      %182 = vector.shape_cast %181 : vector<8xi32> to vector<8x1xi32>
      %183 = vector.broadcast %182 : vector<8x1xi32> to vector<8x128xi32>
      %184 = arith.cmpi eq, %17, %183 : vector<8x128xi32>
      %185 = arith.ori %172, %184 : vector<8x128xi1>
      %cst_65 = arith.constant 0.000000e+00 : f32
      %186 = vector.broadcast %cst_65 : f32 to vector<8x128xf32>
      %187 = arith.select %185, %186, %14 : vector<8x128xi1>, vector<8x128xf32>
      %cst_66 = arith.constant dense<0.000000e+00> : vector<8xf32>
      %188 = vector.multi_reduction <add>, %187, %cst_66 [1] : vector<8x128xf32> to vector<8xf32>
      %189 = vector.shape_cast %188 : vector<8xf32> to vector<8x1xf32>
      %cst_67 = arith.constant 1.280000e+02 : f32
      %190 = vector.broadcast %cst_67 : f32 to vector<8x1xf32>
      %191 = arith.divf %189, %190 : vector<8x1xf32>
      %192 = arith.mulf %15, %191 : vector<8x1xf32>
      %cst_68 = arith.constant 1.000000e-01 : f32
      %193 = vector.broadcast %cst_68 : f32 to vector<8x1xf32>
      %194 = arith.subf %193, %192 : vector<8x1xf32>
      %cst_69 = arith.constant 0.000000e+00 : f32
      %195 = vector.broadcast %cst_69 : f32 to vector<8x1xf32>
      %196 = arith.maximumf %194, %195 : vector<8x1xf32>
      %197 = vector.shape_cast %196 : vector<8x1xf32> to vector<1x8x1xf32>
      %cst_70 = arith.constant dense<0.000000e+00> : vector<1xf32>
      %198 = vector.multi_reduction <add>, %197, %cst_70 [1, 2] : vector<1x8x1xf32> to vector<1xf32>
      %199 = vector.shape_cast %198 : vector<1xf32> to vector<1x1x1xf32>
      %200 = vector.extract %199[0, 0, 0] : f32 from vector<1x1x1xf32>
      %201 = vector.broadcast %200 : f32 to vector<1x1xf32>
      %cst_71 = arith.constant 1.000000e+00 : f32
      %202 = vector.broadcast %cst_71 : f32 to vector<1x1xf32>
      %203 = arith.mulf %202, %201 : vector<1x1xf32>
      %c0_72 = arith.constant 0 : index
      %c0_73 = arith.constant 0 : index
      %204 = vector.load %arg5[%c0_72, %c0_73] : memref<1x1xf32, #tpu.memory_space<vmem>>, vector<1x1xf32>
      tpu.vector_store %arg5[%c0_72, %c0_73], %203 {strides = array<i32>} : memref<1x1xf32, #tpu.memory_space<vmem>>, vector<1x1xf32>,
    } else {
    }
    return
  }
  func.func @transform_0(%arg0: i32, %arg1: memref<2xi32, #tpu.memory_space<smem>>) -> (i32, i32, i32) {
    %c0_i32 = arith.constant 0 : i32
    %c0_i32_0 = arith.constant 0 : i32
    %c0_i32_1 = arith.constant 0 : i32
    return %arg0, %c0_i32, %c0_i32_0 : i32, i32, i32
  }
  func.func @transform_1(%arg0: i32, %arg1: memref<2xi32, #tpu.memory_space<smem>>) -> (i32, i32, i32) {
    %0 = arith.index_cast %arg0 : i32 to index
    %1 = memref.load %arg1[%0] : memref<2xi32, #tpu.memory_space<smem>>
    %c0_i32 = arith.constant 0 : i32
    %c0_i32_0 = arith.constant 0 : i32
    %c0_i32_1 = arith.constant 0 : i32
    return %1, %c0_i32, %c0_i32_0 : i32, i32, i32
  }
  func.func @transform_2(%arg0: i32, %arg1: memref<2xi32, #tpu.memory_space<smem>>) -> (i32, i32) {
    %c0_i32 = arith.constant 0 : i32
    %c0_i32_0 = arith.constant 0 : i32
    %c0_i32_1 = arith.constant 0 : i32
    return %c0_i32, %c0_i32_0 : i32, i32
  }
  func.func @transform_3(%arg0: i32, %arg1: memref<2xi32, #tpu.memory_space<smem>>) -> (i32, i32) {
    %c0_i32 = arith.constant 0 : i32
    %c0_i32_0 = arith.constant 0 : i32
    %c0_i32_1 = arith.constant 0 : i32
    return %c0_i32, %c0_i32_0 : i32, i32
  }
}

</mosaic_0001>

<llo_original>
// kernel: tpu_custom_call.1
$region0: #{tpu_custom_call.1}
  #allocation0 [shape = 'u32[]', space=smem, size = 0x4, offset = 0x4, fixed_abs, tag = 'smem constant byte address 0x4 - core index']
  #allocation1 [shape = 'u32[144,128]{1,0:T(1,128)}', space=vmem, size = 0x12000, scoped, tag = 'internal scratch']
  #allocation2 [shape = 'f32[8,128]{1,0:T(8,128)}', space=vmem, size = 0x1000, scoped, tag = 'scratch operand']
  #allocation3 [shape = 's32[1]{0}', space=sflag, size = 0x4, scoped, tag = 'scoped memory for tpu_custom_call.1']
  #allocation4 [shape = 'u8[512]{0}', space=smem, size = 0x200, scoped, tag = 'prefetched SMEM operand 0']
  %s0 = inlined_call_operand.hbm [shape: s32[2], index: 0, kind: input, shape index: {}]
  %s1 = inlined_call_operand.hbm [shape: f32[16,8,128], index: 1, kind: input, shape index: {}]
  %s2 = inlined_call_operand.vmem [shape: f32[2,8,128], index: 2, kind: input, shape index: {}]
  %s3 = inlined_call_operand.vmem [shape: f32[8,1], index: 3, kind: input, shape index: {}]
  %s4 = inlined_call_operand.hbm [shape: f32[1,1], index: 4, kind: output, shape index: {}]
  %s5 = sld [smem:[#allocation0]]
  $region57: #{tpu_custom_call.1} parent=0
    _
  %s7 = ssub.s32 1, %s5
  %s8 = scalar_select 0, %s7, %s5
  %10 = dma.hbm_to_smem %s0, 16, [#allocation4], [#allocation3]
  %11 = dma.done [#allocation3], 16
  %12 = sfence
  $region1: #{tpu_custom_call.1} parent=0
    #allocation5 [shape = 'u8[65536]{0}', space=vmem, size = 0x10000, scoped, tag = 'input window, operand 1']
    #allocation6 [shape = 's32[2]{0}', space=sflag, size = 0x8, scoped, tag = 'scoped memory for tpu_custom_call.1']
    #allocation7 [shape = 's32[2]{0}', space=sflag, size = 0x8, scoped, tag = 'scoped memory for tpu_custom_call.1']
    #allocation8 [shape = 'u8[512]{0}', space=vmem, size = 0x400, scoped, tag = 'output window, operand 0, single buffered']
    %13 = vsyncpa [#allocation6], 0
    %s14 = scalar_lea.sflag [#allocation6], 1
    %15 = vsyncpa %s14, 0
    %16 = vsyncpa [#allocation7], 0
    loop: start=0, step=1, limit=4
    $region2: #{tpu_custom_call.1} parent=1 // loop_pre_header
      _
    $region3: #{tpu_custom_call.1} parent=1 // loop_header
      %s18 = sphi 0, %s22
      %p19 = scmp.ge.s32.totalorder %s18, 4
      %s28 = sphi 0, %s30
      %s31 = sphi 0, %s28
      %s32 = sphi 0, %s31
      %s48 = sphi 0, %s32
      %s56 = sphi 0, %s58
      %s59 = sphi 0, %s56
      %s60 = sphi 0, %s59
      %s76 = sphi 0, %s60
      %s80 = sphi 0, %s80
      %s82 = sphi 0, %s80
      %s83 = sphi 0, %s82
      %s97 = sphi 0, %s83
      %s101 = sphi 0, %s101
      %s103 = sphi 0, %s101
      %s104 = sphi 0, %s103
      %s118 = sphi 0, %s104
    $region4: #{tpu_custom_call.1} parent=1 // loop_header_branch
      %21 = sbr.rel (%p19) target = $region8
    $region5: #{tpu_custom_call.1} parent=1 // loop_body
      %s23 = ssub.s32 %s18, 1
      %s24 = ssub.s32 %s18, 2
      %s25 = sadd.s32 %s18, 1
      %s26 = ssub.s32 %s18, %s25
      %p27 = scmp.eq.s32.totalorder %s26, 0
      %s29 = sadd.s32 %s28, 1
      %s30 = scalar_select %p27, %s28, %s29
      %p33 = pneg %p27
      %p34 = scmp.eq.s32.totalorder %s18, 1
      %p35 = por %p33, %p34
      %p36 = scmp.ne.s32.totalorder %s28, %s31
      %p37 = scmp.eq.s32.totalorder %s18, 0
      %p38 = por %p36, %p37
      %p39 = scmp.ne.s32.totalorder %s28, %s31
      %p40 = scmp.eq.s32.totalorder %s23, 1
      %p41 = por %p39, %p40
      %p42 = scmp.ne.s32.totalorder %s31, %s32
      %p43 = scmp.eq.s32.totalorder %s23, 0
      %p44 = por %p42, %p43
      %p45 = scmp.ne.s32.totalorder %s31, %s32
      %p46 = scmp.eq.s32.totalorder %s24, 1
      %p47 = por %p45, %p46
      %p49 = scmp.ne.s32.totalorder %s32, %s48
      %p50 = scmp.eq.s32.totalorder %s24, 0
      %p51 = por %p49, %p50
      %s52 = sld [smem:[#allocation4 + %s18]]
      %s53 = sld [smem:[#allocation4 + %s25]]
      %s54 = ssub.s32 %s52, %s53
      %p55 = scmp.eq.s32.totalorder %s54, 0
      %s57 = sadd.s32 %s56, 1
      %s58 = scalar_select %p55, %s56, %s57
      %p61 = pneg %p55
      %p62 = scmp.eq.s32.totalorder %s18, 1
      %p63 = por %p61, %p62
      %p64 = scmp.ne.s32.totalorder %s56, %s59
      %p65 = scmp.eq.s32.totalorder %s18, 0
      %p66 = por %p64, %p65
      %p67 = scmp.ne.s32.totalorder %s56, %s59
      %p68 = scmp.eq.s32.totalorder %s23, 1
      %p69 = por %p67, %p68
      %p70 = scmp.ne.s32.totalorder %s59, %s60
      %p71 = scmp.eq.s32.totalorder %s23, 0
      %p72 = por %p70, %p71
      %p73 = scmp.ne.s32.totalorder %s59, %s60
      %p74 = scmp.eq.s32.totalorder %s24, 1
      %p75 = por %p73, %p74
      %p77 = scmp.ne.s32.totalorder %s60, %s76
      %p78 = scmp.eq.s32.totalorder %s24, 0
      %p79 = por %p77, %p78
      %s81 = sadd.s32 %s80, 1
      %p84 = scmp.eq.s32.totalorder %s18, 1
      %p85 = scmp.ne.s32.totalorder %s80, %s82
      %p86 = scmp.eq.s32.totalorder %s18, 0
      %p87 = por %p85, %p86
      %p88 = scmp.ne.s32.totalorder %s80, %s82
      %p89 = scmp.eq.s32.totalorder %s23, 1
      %p90 = por %p88, %p89
      %p91 = scmp.ne.s32.totalorder %s82, %s83
      %p92 = scmp.eq.s32.totalorder %s23, 0
      %p93 = por %p91, %p92
      %p94 = scmp.ne.s32.totalorder %s82, %s83
      %p95 = scmp.eq.s32.totalorder %s24, 1
      %p96 = por %p94, %p95
      %p98 = scmp.ne.s32.totalorder %s83, %s97
      %p99 = scmp.eq.s32.totalorder %s24, 0
      %p100 = por %p98, %p99
      %s102 = sadd.s32 %s101, 1
      %p105 = scmp.eq.s32.totalorder %s18, 1
      %p106 = scmp.ne.s32.totalorder %s101, %s103
      %p107 = scmp.eq.s32.totalorder %s18, 0
      %p108 = por %p106, %p107
      %p109 = scmp.ne.s32.totalorder %s101, %s103
      %p110 = scmp.eq.s32.totalorder %s23, 1
      %p111 = por %p109, %p110
      %p112 = scmp.ne.s32.totalorder %s103, %s104
      %p113 = scmp.eq.s32.totalorder %s23, 0
      %p114 = por %p112, %p113
      %p115 = scmp.ne.s32.totalorder %s103, %s104
      %p116 = scmp.eq.s32.totalorder %s24, 1
      %p117 = por %p115, %p116
      %p119 = scmp.ne.s32.totalorder %s104, %s118
      %p120 = scmp.eq.s32.totalorder %s24, 0
      %p121 = por %p119, %p120
      %p122 = scmp.le.s32.totalorder 1, %s18
      %p123 = scmp.lt.s32.totalorder %s18, 3
      %p124 = pnand %p122, %p123
      %p125 = pneg %p124
      // Predicated region
      $region9: #{tpu_custom_call.1} parent=5 // pred_check
        _
      $region10: #{tpu_custom_call.1} parent=5 // pred_check_branch
        %127 = sbr.rel (%p124) target = $region12
      $region11: #{tpu_custom_call.1} parent=5 // pred_region
        %s128 = ssub.s32 %s18, 1
        // Predicated region
        $region13: #{tpu_custom_call.1} parent=11 // pred_check
          %p129 = pneg %p93
        $region14: #{tpu_custom_call.1} parent=11 // pred_check_branch
          %131 = sbr.rel (%p129) target = $region16
        $region15: #{tpu_custom_call.1} parent=11 // pred_region
          _
        $region16: #{tpu_custom_call.1} parent=11 // pred_fallthru
          _
      $region12: #{tpu_custom_call.1} parent=5 // pred_fallthru
        _
      %p132 = scmp.lt.s32.totalorder %s18, 2
      // Predicated region
      $region17: #{tpu_custom_call.1} parent=5 // pred_check
        %p133 = pneg %p132
      $region18: #{tpu_custom_call.1} parent=5 // pred_check_branch
        %135 = sbr.rel (%p133) target = $region20
      $region19: #{tpu_custom_call.1} parent=5 // pred_region
        // Predicated region
        $region21: #{tpu_custom_call.1} parent=19 // pred_check
          %p136 = pneg %p38
        $region22: #{tpu_custom_call.1} parent=19 // pred_check_branch
          %138 = sbr.rel (%p136) target = $region24
        $region23: #{tpu_custom_call.1} parent=19 // pred_region
          %s139 = sand.u32 %s28, 1
          %s140 = scalar_lea.sflag [#allocation6], %s139
          %s141 = sand.u32 %s28, 1
          %s142 = smul.addr %s141, 64
          %s143 = scalar_lea.vmem [#allocation5], %s142
          %s144 = smul.u32 8, %s18
          %s146 = ssub.s32 1024, 1024
          %147 = vsyncadd %s140, %s146
          %s148 = smul.addr %s144, 128
          %s149 = scalar_lea.hbm %s1, %s148
          %s150 = sshll.u32 %s143, 4
          %s151 = int_to_ptr.vmem [resolvable:$true] %s150
          %156 = dma.hbm_to_vmem [thread:$0]  %s149, 1024, %s151, %s140, 128, 128, 8
        $region24: #{tpu_custom_call.1} parent=19 // pred_fallthru
          _
        // Predicated region
        $region25: #{tpu_custom_call.1} parent=19 // pred_check
          %p157 = pneg %p66
        $region26: #{tpu_custom_call.1} parent=19 // pred_check_branch
          %159 = sbr.rel (%p157) target = $region28
        $region27: #{tpu_custom_call.1} parent=19 // pred_region
          %s160 = sld [smem:[#allocation4 + %s18]]
          %p161 = scmp.lt.s32.totalorder %s160, 1
          %s162 = scalar_select %p161, %s160, 1
          %s163 = smul.addr %s162, 8
          %s164 = scalar_lea.vmem %s2, %s163
          %s165 = sld [smem:[#allocation4 + %s18]]
        $region28: #{tpu_custom_call.1} parent=19 // pred_fallthru
          _
      $region20: #{tpu_custom_call.1} parent=5 // pred_fallthru
        _
      %p166 = scmp.le.s32.totalorder 1, %s18
      %p167 = scmp.lt.s32.totalorder %s18, 3
      %p168 = pnand %p166, %p167
      %p169 = pneg %p168
      // Predicated region
      $region29: #{tpu_custom_call.1} parent=5 // pred_check
        _
      $region30: #{tpu_custom_call.1} parent=5 // pred_check_branch
        %171 = sbr.rel (%p168) target = $region32
      $region31: #{tpu_custom_call.1} parent=5 // pred_region
        %s172 = ssub.s32 %s18, 1
        %s173 = sand.u32 %s31, 1
        %s174 = scalar_lea.sflag [#allocation6], %s173
        %s175 = sand.u32 %s31, 1
        %s176 = smul.addr %s175, 64
        %s177 = scalar_lea.vmem [#allocation5], %s176
        // Predicated region
        $region33: #{tpu_custom_call.1} parent=31 // pred_check
          %p178 = pneg %p44
        $region34: #{tpu_custom_call.1} parent=31 // pred_check_branch
          %180 = sbr.rel (%p178) target = $region36
        $region35: #{tpu_custom_call.1} parent=31 // pred_region
          %181 = dma.done %s174, 1024
        $region36: #{tpu_custom_call.1} parent=31 // pred_fallthru
          _
        %s182 = sand.u32 %s31, 1
        %s183 = scalar_lea.sflag [#allocation6], %s182
        %s184 = sand.u32 %s31, 1
        %s185 = smul.addr %s184, 64
        %s186 = scalar_lea.vmem [#allocation5], %s185
        %p187 = pneg %p44
        %p188 = pneg %p41
        %s189 = sld [smem:[#allocation4 + %s23]]
        %p190 = scmp.lt.s32.totalorder %s189, 1
        %s191 = scalar_select %p190, %s189, 1
        %s192 = smul.addr %s191, 8
        %s193 = scalar_lea.vmem %s2, %s192
        %p194 = pneg %p72
        %p195 = pneg %p69
        %p196 = pneg %p93
        %p197 = pneg %p90
        %p198 = pneg %p114
        %p199 = pneg %p111
        %s200 = smul.u32 8, %s23
        %s201 = sld [smem:[#allocation4 + %s23]]
        %p202 = scmp.lt.s32.totalorder %s201, 1
        %s203 = scalar_select %p202, %s201, 1
        %s204 = smul.addr %s203, 8
        %s205 = scalar_lea.vmem %s2, %s204
        %s206 = sld [smem:[#allocation4 + %s23]]
        %p207 = scmp.eq.s32.totalorder %s23, 0
        // Predicated region
        $region37: #{tpu_custom_call.1} parent=31 // pred_check
          %p208 = pneg %p207
        $region38: #{tpu_custom_call.1} parent=31 // pred_check_branch
          %210 = sbr.rel (%p208) target = $region40
        $region39: #{tpu_custom_call.1} parent=31 // pred_region
          %211 = vst [vmem:[#allocation2] sm:$0xff] 0.0
        $region40: #{tpu_custom_call.1} parent=31 // pred_fallthru
          _
        %v212 = vld [vmem:[%s177] sm:$0xff]
        %v213 = vld [vmem:[%s177 + $0x8] sm:$0xff]
        %v214 = vld [vmem:[%s177 + $0x10] sm:$0xff]
        %v215 = vld [vmem:[%s177 + $0x18] sm:$0xff]
        %v216 = vld [vmem:[%s177 + $0x20] sm:$0xff]
        %v217 = vld [vmem:[%s177 + $0x28] sm:$0xff]
        %v218 = vld [vmem:[%s177 + $0x30] sm:$0xff]
        %v219 = vld [vmem:[%s177 + $0x38] sm:$0xff]
        %v220 = vadd.f32 %v212, %v213
        %v221 = vadd.f32 %v220, %v214
        %v222 = vadd.f32 %v221, %v215
        %v223 = vadd.f32 %v222, %v216
        %v224 = vadd.f32 %v223, %v217
        %v225 = vadd.f32 %v224, %v218
        %v226 = vadd.f32 %v225, %v219
        %v227 = vld [vmem:[#allocation2] sm:$0xff]
        %v228 = vld [vmem:[%s205] sm:$0xff]
        %v229 = vmul.f32 %v226, %v228
        %v230 = vadd.f32 %v227, %v229
        %231 = vst [vmem:[#allocation2] sm:$0xff] %v230
        %p232 = scmp.eq.s32.totalorder %s23, 1
        // Predicated region
        $region41: #{tpu_custom_call.1} parent=31 // pred_check
          %p233 = pneg %p232
        $region42: #{tpu_custom_call.1} parent=31 // pred_check_branch
          %235 = sbr.rel (%p233) target = $region44
        $region43: #{tpu_custom_call.1} parent=31 // pred_region
          %v236 = vld [vmem:[#allocation2] sm:$0xff]
          %v237 = vld [vmem:[%s3] sm:$0xff]
          %v238 = vand.u32 2147483647, %v236
          %v239 = vlaneseq
          %v240 = vand.u32 %v239, 127
          %241 = vmin.xlane.f32.xlu0 %v238
          %v242 = vpop.xlane.xlu0 %241
          %vm243 = vcmp.eq.f32.partialorder %v238, %v242
          %v244 = vsel %vm243, %v240, 128
          %v245 = vand.u32 %v244, 65535
          %v246 = vshra.s32 %v244, 16
          %v247 = vcvt.s32.f32 %v245
          %v248 = vcvt.s32.f32 %v246
          %249 = vmin.xlane.f32.xlu0 %v248
          %v250 = vpop.xlane.xlu0 %249
          %vm251 = vcmp.eq.f32.partialorder %v248, %v250
          %v252 = vsel %vm251, %v247, inf
          %253 = vmin.xlane.f32.xlu0 %v252
          %v254 = vpop.xlane.xlu0 %253
          %v255 = vcvt.f32.s32 %v254
          %v256 = vcvt.f32.s32 %v250
          %v257 = vshll.u32 %v256, 16
          %v258 = vadd.s32 %v257, %v255
          %vm259 = vcmp.eq.s32.totalorder %v240, %v258
          %v260 = vsel %vm259, 3.4028235e+38, %v238
          %261 = vmin.xlane.f32.xlu0 %v260
          %v262 = vpop.xlane.xlu0 %261
          %vm263 = vcmp.eq.f32.partialorder %v260, %v262
          %v264 = vsel %vm263, %v240, 128
          %v265 = vand.u32 %v264, 65535
          %v266 = vshra.s32 %v264, 16
          %v267 = vcvt.s32.f32 %v265
          %v268 = vcvt.s32.f32 %v266
          %269 = vmin.xlane.f32.xlu0 %v268
          %v270 = vpop.xlane.xlu0 %269
          %vm271 = vcmp.eq.f32.partialorder %v268, %v270
          %v272 = vsel %vm271, %v267, inf
          %273 = vmin.xlane.f32.xlu0 %v272
          %v274 = vpop.xlane.xlu0 %273
          %v275 = vcvt.f32.s32 %v274
          %v276 = vcvt.f32.s32 %v270
          %v277 = vshll.u32 %v276, 16
          %v278 = vadd.s32 %v277, %v275
          %vm279 = vcmp.eq.s32.totalorder %v240, %v278
          %vm280 = vmor %vm259, %vm279
          %v281 = vsel %vm279, 3.4028235e+38, %v260
          %282 = vmin.xlane.f32.xlu0 %v281
          %v283 = vpop.xlane.xlu0 %282
          %vm284 = vcmp.eq.f32.partialorder %v281, %v283
          %v285 = vsel %vm284, %v240, 128
          %v286 = vand.u32 %v285, 65535
          %v287 = vshra.s32 %v285, 16
          %v288 = vcvt.s32.f32 %v286
          %v289 = vcvt.s32.f32 %v287
          %290 = vmin.xlane.f32.xlu0 %v289
          %v291 = vpop.xlane.xlu0 %290
          %vm292 = vcmp.eq.f32.partialorder %v289, %v291
          %v293 = vsel %vm292, %v288, inf
          %294 = vmin.xlane.f32.xlu0 %v293
          %v295 = vpop.xlane.xlu0 %294
          %v296 = vcvt.f32.s32 %v295
          %v297 = vcvt.f32.s32 %v291
          %v298 = vshll.u32 %v297, 16
          %v299 = vadd.s32 %v298, %v296
          %vm300 = vcmp.eq.s32.totalorder %v240, %v299
          %vm301 = vmor %vm280, %vm300
          %v302 = vsel %vm300, 3.4028235e+38, %v281
          %303 = vmin.xlane.f32.xlu0 %v302
          %v304 = vpop.xlane.xlu0 %303
          %vm305 = vcmp.eq.f32.partialorder %v302, %v304
          %v306 = vsel %vm305, %v240, 128
          %v307 = vand.u32 %v306, 65535
          %v308 = vshra.s32 %v306, 16
          %v309 = vcvt.s32.f32 %v307
          %v310 = vcvt.s32.f32 %v308
          %311 = vmin.xlane.f32.xlu0 %v310
          %v312 = vpop.xlane.xlu0 %311
          %vm313 = vcmp.eq.f32.partialorder %v310, %v312
          %v314 = vsel %vm313, %v309, inf
          %315 = vmin.xlane.f32.xlu0 %v314
          %v316 = vpop.xlane.xlu0 %315
          %v317 = vcvt.f32.s32 %v316
          %v318 = vcvt.f32.s32 %v312
          %v319 = vshll.u32 %v318, 16
          %v320 = vadd.s32 %v319, %v317
          %vm321 = vcmp.eq.s32.totalorder %v240, %v320
          %vm322 = vmor %vm301, %vm321
          %v323 = vsel %vm321, 3.4028235e+38, %v302
          %324 = vmin.xlane.f32.xlu0 %v323
          %v325 = vpop.xlane.xlu0 %324
          %vm326 = vcmp.eq.f32.partialorder %v323, %v325
          %v327 = vsel %vm326, %v240, 128
          %v328 = vand.u32 %v327, 65535
          %v329 = vshra.s32 %v327, 16
          %v330 = vcvt.s32.f32 %v328
          %v331 = vcvt.s32.f32 %v329
          %332 = vmin.xlane.f32.xlu0 %v331
          %v333 = vpop.xlane.xlu0 %332
          %vm334 = vcmp.eq.f32.partialorder %v331, %v333
          %v335 = vsel %vm334, %v330, inf
          %336 = vmin.xlane.f32.xlu0 %v335
          %v337 = vpop.xlane.xlu0 %336
          %v338 = vcvt.f32.s32 %v337
          %v339 = vcvt.f32.s32 %v333
          %v340 = vshll.u32 %v339, 16
          %v341 = vadd.s32 %v340, %v338
          %vm342 = vcmp.eq.s32.totalorder %v240, %v341
          %vm343 = vmor %vm322, %vm342
          %v344 = vsel %vm342, 3.4028235e+38, %v323
          %345 = vmin.xlane.f32.xlu0 %v344
          %v346 = vpop.xlane.xlu0 %345
          %vm347 = vcmp.eq.f32.partialorder %v344, %v346
          %v348 = vsel %vm347, %v240, 128
          %v349 = vand.u32 %v348, 65535
          %v350 = vshra.s32 %v348, 16
          %v351 = vcvt.s32.f32 %v349
          %v352 = vcvt.s32.f32 %v350
          %353 = vmin.xlane.f32.xlu0 %v352
          %v354 = vpop.xlane.xlu0 %353
          %vm355 = vcmp.eq.f32.partialorder %v352, %v354
          %v356 = vsel %vm355, %v351, inf
          %357 = vmin.xlane.f32.xlu0 %v356
          %v358 = vpop.xlane.xlu0 %357
          %v359 = vcvt.f32.s32 %v358
          %v360 = vcvt.f32.s32 %v354
          %v361 = vshll.u32 %v360, 16
          %v362 = vadd.s32 %v361, %v359
          %vm363 = vcmp.eq.s32.totalorder %v240, %v362
          %vm364 = vmor %vm343, %vm363
          %v365 = vsel %vm363, 3.4028235e+38, %v344
          %366 = vmin.xlane.f32.xlu0 %v365
          %v367 = vpop.xlane.xlu0 %366
          %vm368 = vcmp.eq.f32.partialorder %v365, %v367
          %v369 = vsel %vm368, %v240, 128
          %v370 = vand.u32 %v369, 65535
          %v371 = vshra.s32 %v369, 16
          %v372 = vcvt.s32.f32 %v370
          %v373 = vcvt.s32.f32 %v371
          %374 = vmin.xlane.f32.xlu0 %v373
          %v375 = vpop.xlane.xlu0 %374
          %vm376 = vcmp.eq.f32.partialorder %v373, %v375
          %v377 = vsel %vm376, %v372, inf
          %378 = vmin.xlane.f32.xlu0 %v377
          %v379 = vpop.xlane.xlu0 %378
          %v380 = vcvt.f32.s32 %v379
          %v381 = vcvt.f32.s32 %v375
          %v382 = vshll.u32 %v381, 16
          %v383 = vadd.s32 %v382, %v380
          %vm384 = vcmp.eq.s32.totalorder %v240, %v383
          %vm385 = vmor %vm364, %vm384
          %v386 = vsel %vm384, 3.4028235e+38, %v365
          %387 = vmin.xlane.f32.xlu0 %v386
          %v388 = vpop.xlane.xlu0 %387
          %vm389 = vcmp.eq.f32.partialorder %v386, %v388
          %v390 = vsel %vm389, %v240, 128
          %v391 = vand.u32 %v390, 65535
          %v392 = vshra.s32 %v390, 16
          %v393 = vcvt.s32.f32 %v391
          %v394 = vcvt.s32.f32 %v392
          %395 = vmin.xlane.f32.xlu0 %v394
          %v396 = vpop.xlane.xlu0 %395
          %vm397 = vcmp.eq.f32.partialorder %v394, %v396
          %v398 = vsel %vm397, %v393, inf
          %399 = vmin.xlane.f32.xlu0 %v398
          %v400 = vpop.xlane.xlu0 %399
          %v401 = vcvt.f32.s32 %v400
          %v402 = vcvt.f32.s32 %v396
          %v403 = vshll.u32 %v402, 16
          %v404 = vadd.s32 %v403, %v401
          %vm405 = vcmp.eq.s32.totalorder %v240, %v404
          %vm406 = vmor %vm385, %vm405
          %v407 = vsel %vm405, 3.4028235e+38, %v386
          %408 = vmin.xlane.f32.xlu0 %v407
          %v409 = vpop.xlane.xlu0 %408
          %vm410 = vcmp.eq.f32.partialorder %v407, %v409
          %v411 = vsel %vm410, %v240, 128
          %v412 = vand.u32 %v411, 65535
          %v413 = vshra.s32 %v411, 16
          %v414 = vcvt.s32.f32 %v412
          %v415 = vcvt.s32.f32 %v413
          %416 = vmin.xlane.f32.xlu0 %v415
          %v417 = vpop.xlane.xlu0 %416
          %vm418 = vcmp.eq.f32.partialorder %v415, %v417
          %v419 = vsel %vm418, %v414, inf
          %420 = vmin.xlane.f32.xlu0 %v419
          %v421 = vpop.xlane.xlu0 %420
          %v422 = vcvt.f32.s32 %v421
          %v423 = vcvt.f32.s32 %v417
          %v424 = vshll.u32 %v423, 16
          %v425 = vadd.s32 %v424, %v422
          %vm426 = vcmp.eq.s32.totalorder %v240, %v425
          %vm427 = vmor %vm406, %vm426
          %v428 = vsel %vm426, 3.4028235e+38, %v407
          %429 = vmin.xlane.f32.xlu0 %v428
          %v430 = vpop.xlane.xlu0 %429
          %vm431 = vcmp.eq.f32.partialorder %v428, %v430
          %v432 = vsel %vm431, %v240, 128
          %v433 = vand.u32 %v432, 65535
          %v434 = vshra.s32 %v432, 16
          %v435 = vcvt.s32.f32 %v433
          %v436 = vcvt.s32.f32 %v434
          %437 = vmin.xlane.f32.xlu0 %v436
          %v438 = vpop.xlane.xlu0 %437
          %vm439 = vcmp.eq.f32.partialorder %v436, %v438
          %v440 = vsel %vm439, %v435, inf
          %441 = vmin.xlane.f32.xlu0 %v440
          %v442 = vpop.xlane.xlu0 %441
          %v443 = vcvt.f32.s32 %v442
          %v444 = vcvt.f32.s32 %v438
          %v445 = vshll.u32 %v444, 16
          %v446 = vadd.s32 %v445, %v443
          %vm447 = vcmp.eq.s32.totalorder %v240, %v446
          %vm448 = vmor %vm427, %vm447
          %v449 = vsel %vm447, 3.4028235e+38, %v428
          %450 = vmin.xlane.f32.xlu0 %v449
          %v451 = vpop.xlane.xlu0 %450
          %vm452 = vcmp.eq.f32.partialorder %v449, %v451
          %v453 = vsel %vm452, %v240, 128
          %v454 = vand.u32 %v453, 65535
          %v455 = vshra.s32 %v453, 16
          %v456 = vcvt.s32.f32 %v454
          %v457 = vcvt.s32.f32 %v455
          %458 = vmin.xlane.f32.xlu0 %v457
          %v459 = vpop.xlane.xlu0 %458
          %vm460 = vcmp.eq.f32.partialorder %v457, %v459
          %v461 = vsel %vm460, %v456, inf
          %462 = vmin.xlane.f32.xlu0 %v461
          %v463 = vpop.xlane.xlu0 %462
          %v464 = vcvt.f32.s32 %v463
          %v465 = vcvt.f32.s32 %v459
          %v466 = vshll.u32 %v465, 16
          %v467 = vadd.s32 %v466, %v464
          %vm468 = vcmp.eq.s32.totalorder %v240, %v467
          %vm469 = vmor %vm448, %vm468
          %v470 = vsel %vm468, 3.4028235e+38, %v449
          %471 = vmin.xlane.f32.xlu0 %v470
          %v472 = vpop.xlane.xlu0 %471
          %vm473 = vcmp.eq.f32.partialorder %v470, %v472
          %v474 = vsel %vm473, %v240, 128
          %v475 = vand.u32 %v474, 65535
          %v476 = vshra.s32 %v474, 16
          %v477 = vcvt.s32.f32 %v475
          %v478 = vcvt.s32.f32 %v476
          %479 = vmin.xlane.f32.xlu0 %v478
          %v480 = vpop.xlane.xlu0 %479
          %vm481 = vcmp.eq.f32.partialorder %v478, %v480
          %v482 = vsel %vm481, %v477, inf
          %483 = vmin.xlane.f32.xlu0 %v482
          %v484 = vpop.xlane.xlu0 %483
          %v485 = vcvt.f32.s32 %v484
          %v486 = vcvt.f32.s32 %v480
          %v487 = vshll.u32 %v486, 16
          %v488 = vadd.s32 %v487, %v485
          %vm489 = vcmp.eq.s32.totalorder %v240, %v488
          %vm490 = vmor %vm469, %vm489
          %v491 = vsel %vm489, 3.4028235e+38, %v470
          %492 = vmin.xlane.f32.xlu0 %v491
          %v493 = vpop.xlane.xlu0 %492
          %vm494 = vcmp.eq.f32.partialorder %v491, %v493
          %v495 = vsel %vm494, %v240, 128
          %v496 = vand.u32 %v495, 65535
          %v497 = vshra.s32 %v495, 16
          %v498 = vcvt.s32.f32 %v496
          %v499 = vcvt.s32.f32 %v497
          %500 = vmin.xlane.f32.xlu0 %v499
          %v501 = vpop.xlane.xlu0 %500
          %vm502 = vcmp.eq.f32.partialorder %v499, %v501
          %v503 = vsel %vm502, %v498, inf
          %504 = vmin.xlane.f32.xlu0 %v503
          %v505 = vpop.xlane.xlu0 %504
          %v506 = vcvt.f32.s32 %v505
          %v507 = vcvt.f32.s32 %v501
          %v508 = vshll.u32 %v507, 16
          %v509 = vadd.s32 %v508, %v506
          %vm510 = vcmp.eq.s32.totalorder %v240, %v509
          %vm511 = vmor %vm490, %vm510
          %v512 = vsel %vm511, 0.0, %v236
          %513 = vadd.xlane.f32.xlu0 %v512
          %v514 = vpop.xlane.xlu0 %513
          %v515 = vrcp.pop 128.0
          %v516 = vmul.f32 %v514, %v515
          %v517 = vmul.f32 %v237, %v516
          %v518 = vsub.f32 0.1, %v517
          %v519 = vmax.f32 %v518, 0.0
          %vm520 = vcmask 7168
          %v521 = vsel %vm520, %v519, 0.0
          %522 = vadd.xlane.f32.xlu0 %v521
          %v523 = vpop.xlane.xlu0 %522
          %v524 = vrot.slane %v523, 4
          %v525 = vadd.f32 %v523, %v524
          %v526 = vrot.slane %v525, 2
          %v527 = vadd.f32 %v525, %v526
          %v528 = vrot.slane %v527, 1
          %v529 = vadd.f32 %v527, %v528
          %s530 = vtos %v529
          %v531 = vstv %s530
          %vm532 = vcmask 0
          %533 = vst.msk [vmem:[#allocation8] sm:$0x1] %vm532, %v531
        $region44: #{tpu_custom_call.1} parent=31 // pred_fallthru
          _
        // Predicated region
        $region45: #{tpu_custom_call.1} parent=31 // pred_check
          %p534 = pneg %p111
        $region46: #{tpu_custom_call.1} parent=31 // pred_check_branch
          %536 = sbr.rel (%p534) target = $region48
        $region47: #{tpu_custom_call.1} parent=31 // pred_region
          %s538 = ssub.s32 16, 16
          %539 = vsyncadd [#allocation7], %s538
          %s541 = sshll.u32 [#allocation8], 4
          %s542 = int_to_ptr.vmem [resolvable:$true] %s541
          %544 = dma.vmem_to_hbm [thread:$0]  %s542, 16, %s4, [#allocation7]
        $region48: #{tpu_custom_call.1} parent=31 // pred_fallthru
          _
        // Predicated region
        $region49: #{tpu_custom_call.1} parent=31 // pred_check
          %p545 = pneg %p111
        $region50: #{tpu_custom_call.1} parent=31 // pred_check_branch
          %547 = sbr.rel (%p545) target = $region52
        $region51: #{tpu_custom_call.1} parent=31 // pred_region
          %548 = dma.done [#allocation7], 16
        $region52: #{tpu_custom_call.1} parent=31 // pred_fallthru
          _
      $region32: #{tpu_custom_call.1} parent=5 // pred_fallthru
        _
      %p549 = scmp.le.s32.totalorder 2, %s18
      // Predicated region
      $region53: #{tpu_custom_call.1} parent=5 // pred_check
        %p550 = pneg %p549
      $region54: #{tpu_custom_call.1} parent=5 // pred_check_branch
        %552 = sbr.rel (%p550) target = $region56
      $region55: #{tpu_custom_call.1} parent=5 // pred_region
        %s553 = ssub.s32 %s18, 2
      $region56: #{tpu_custom_call.1} parent=5 // pred_fallthru
        _
    $region6: #{tpu_custom_call.1} parent=1 // loop_footer
      %s22 = sadd.s32 1, %s18
    $region7: #{tpu_custom_call.1} parent=1 // loop_footer_branch
      %17 = sbr.rel target = $region3
    $region8: #{tpu_custom_call.1} parent=1 // loop_exit
      _
    %554 = vsyncpa [#allocation6], 1
    %s555 = scalar_lea.sflag [#allocation6], 1
    %556 = vsyncpa %s555, 1
    %557 = vsyncpa [#allocation7], 1
    %s558 = scalar_lea.sflag [#allocation7], 1
    %559 = vsyncpa %s558, 1

</llo_original>
